<compile_context>
chip_gen: v6e
topology: v6e:2x2x1
jax: 0.10.0
libtpu: 0.0.40
codegen_flags: <defaults>
</compile_context>

<pallas_src>
import functools

import jax
import jax.numpy as jnp
from jax.experimental import pallas as pl
from jax.experimental.pallas import tpu as pltpu


def _round_up(x, m):
    return ((x + m - 1) // m) * m


def _im2col(xa_ref, xb_ref, ksize):
    """Build the (K*Cin_p, t_tile) im2col block for the current time tile.

    xa_ref : (1, Cin_p, t_tile)   current tile of the pre-padded input
    xb_ref : (1, Cin_p, 128)      narrow right-halo block (None when ksize==1)
    """
    xa = xa_ref[0]                                    # (Cin_p, t_tile)
    if ksize == 1:
        return xa
    t_tile = xa.shape[1]
    # Lane-aligned concat (t_tile and 128 are both multiples of 128); each tap
    # is then a shifted window — far cheaper than a 2*t_tile-wide temporary.
    xw = jnp.concatenate([xa, xb_ref[0]], axis=1)     # (Cin_p, t_tile + 128)
    taps = [xa] + [xw[:, k:k + t_tile] for k in range(1, ksize)]
    return jnp.concatenate(taps, axis=0)              # (K*Cin_p, t_tile)


def _conv_stats_kernel(*refs, ksize, t_tile, last_valid):
    """Pass 1: conv on one (batch, time-tile) block -> GlobLN partial stats only.

    Inputs (halo omitted when ksize == 1):
      xa_ref (1,Cin_p,t_tile), [xb_ref (1,Cin_p,128)], w_ref (Cout,K*Cin_p),
      b_ref (Cout,1) f32.
    Output:
      st_ref (1,1,2,128) f32 — row 0 = sum, row 1 = sum of squares of this tile.
    """
    if ksize > 1:
        xa_ref, xb_ref, w_ref, b_ref, st_ref = refs
    else:
        xa_ref, w_ref, b_ref, st_ref = refs
        xb_ref = None

    x_col = _im2col(xa_ref, xb_ref, ksize)
    acc = jnp.dot(w_ref[...], x_col, preferred_element_type=jnp.float32)
    acc = acc + b_ref[...]                            # (Cout, t_tile), f32

    def write_stats(vals):
        # TODO(synk): single-pass sum/sumsq in f32; switch to per-tile centered
        # partials + Chan's merge if cancellation ever bites at huge T.
        s = jnp.sum(vals)
        ss = jnp.sum(vals * vals)
        row = jax.lax.broadcasted_iota(jnp.int32, (2, 128), 0)
        st_ref[0, 0] = jnp.where(row == 0, s, ss)

    if last_valid == t_tile:
        # T_out is tile-aligned: no masking anywhere (static).
        write_stats(acc)
    else:
        t = pl.program_id(1)
        nt = pl.num_programs(1)

        @pl.when(t != nt - 1)
        def _():
            write_stats(acc)                          # interior tiles: no mask

        @pl.when(t == nt - 1)
        def _():
            col = jax.lax.broadcasted_iota(jnp.int32, acc.shape, 1)
            write_stats(jnp.where(col < last_valid, acc, 0.0))


def _conv_norm_act_kernel(*refs, ksize):
    """Pass 2: recompute conv, apply folded GlobLN affine + PReLU.

    Inputs (halo omitted when ksize == 1):
      xa_ref (1,Cin_p,t_tile), [xb_ref (1,Cin_p,128)], w_ref (Cout,K*Cin_p),
      sc_ref (1,Cout,1)  = gamma * rstd,
      sh_ref (1,Cout,1)  = beta - mean*gamma*rstd + gamma*rstd*conv_bias,
      alpha_ref (1,1) SMEM  = shared PReLU slope.
    Output:
      o_ref (1,Cout,t_tile)  lane-dense store.
    """
    if ksize > 1:
        xa_ref, xb_ref, w_ref, sc_ref, sh_ref, alpha_ref, o_ref = refs
    else:
        xa_ref, w_ref, sc_ref, sh_ref, alpha_ref, o_ref = refs
        xb_ref = None

    x_col = _im2col(xa_ref, xb_ref, ksize)
    acc = jnp.dot(w_ref[...], x_col, preferred_element_type=jnp.float32)
    y = acc * sc_ref[0] + sh_ref[0]                   # conv bias folded into shift
    alpha = alpha_ref[0, 0]
    o_ref[0] = jnp.where(y >= 0, y, alpha * y).astype(o_ref.dtype)


def conv_norm_act(x_ncl, weight, bias, gamma, beta, alpha, *,
                  stride=1, t_tile=512, compute_dtype=None,
                  vmem_limit_bytes=48 * 1024 * 1024):
    """ConvNormAct forward.  x_ncl: [B, Cin, T] (torch NCL) -> [B, Cout, T_out]."""
    # TODO(synk): stride > 1 and groups > 1 not implemented (module defaults are 1).
    assert stride == 1, "this kernel supports stride=1 (module default)"
    B, Cin, T = x_ncl.shape
    Cout, Cin_w, K = weight.shape
    assert Cin_w == Cin
    assert K - 1 <= 128, "halo block is 128 lanes wide"

    pad_l = (K - 1) // 2
    T_out = T + 2 * pad_l - K + 1

    # Time tile: multiple of 128 so every output block is lane-dense (unmasked
    # vst).  v5e/v6e can push this to 1024; keep <=512 on v7x (64 MiB VMEM).
    t_tile = max(128, min(_round_up(t_tile, 128), _round_up(T_out, 128)))
    nt = pl.cdiv(T_out, t_tile)
    t_out_pad = nt * t_tile
    last_valid = T_out - (nt - 1) * t_tile            # valid cols of the last tile
    halo_w = 128
    t_in_pad = t_out_pad + (halo_w if K > 1 else 0)   # right halo of last tile exists

    if compute_dtype is None:
        # bf16 MXU inputs (f32 accumulation / f32 stats): halves x & w DMA and
        # doubles MXU rate.  Pass jnp.float32 for exact numerics.
        compute_dtype = jnp.bfloat16

    Cin_p = _round_up(Cin, 8)                         # sublane-aligned im2col

    # Single wrapper-side pass over the activation (no transposes): conv 'same'
    # left pad, tile-alignment + halo right pad, channel pad, dtype cast.
    x_p = jnp.pad(x_ncl, ((0, 0), (0, Cin_p - Cin), (pad_l, t_in_pad - pad_l - T)))
    x_p = x_p.astype(compute_dtype)

    # Weight rows k-major to match the in-kernel im2col [tap0 | tap1 | ...]:
    # w2d[o, k*Cin_p + c] = weight[o, c, k] (zero for padded channels).
    w_p = jnp.pad(weight, ((0, 0), (0, Cin_p - Cin), (0, 0)))
    w2d = jnp.transpose(w_p, (0, 2, 1)).reshape(Cout, K * Cin_p).astype(compute_dtype)
    b2d = bias.astype(jnp.float32).reshape(Cout, 1)

    tpb = t_tile // 128
    x_spec = pl.BlockSpec((1, Cin_p, t_tile), lambda b, t: (b, 0, t))
    halo_spec = pl.BlockSpec((1, Cin_p, halo_w), lambda b, t: (b, 0, (t + 1) * tpb))
    w_spec = pl.BlockSpec((Cout, K * Cin_p), lambda b, t: (0, 0))

    cparams = pltpu.CompilerParams(
        dimension_semantics=("parallel", "parallel"),  # v7x: shard (B, nt) over 2 TCs
        vmem_limit_bytes=vmem_limit_bytes)

    # ---------------- Pass 1: conv + per-tile GlobLN partial stats ----------------
    stats_kernel = functools.partial(_conv_stats_kernel, ksize=K,
                                     t_tile=t_tile, last_valid=last_valid)
    in_specs1 = ([x_spec] + ([halo_spec] if K > 1 else [])
                 + [w_spec, pl.BlockSpec((Cout, 1), lambda b, t: (0, 0))])
    in_args1 = [x_p] + ([x_p] if K > 1 else []) + [w2d, b2d]

    stats = pl.pallas_call(
        stats_kernel,
        out_shape=jax.ShapeDtypeStruct((B, nt, 2, 128), jnp.float32),
        grid_spec=pltpu.PrefetchScalarGridSpec(
            num_scalar_prefetch=0, grid=(B, nt),
            in_specs=in_specs1,
            out_specs=pl.BlockSpec((1, 1, 2, 128), lambda b, t: (b, t, 0, 0))),
        compiler_params=cparams,
    )(*in_args1)

    # Tiny O(B*nt + B*Cout) XLA reduction: fold GlobLN (+ conv bias) into
    # per-(batch, channel) scale/shift.  f32 accumulators, rsqrt not 1/sqrt.
    s = jnp.sum(stats[:, :, 0, 0], axis=1)
    ss = jnp.sum(stats[:, :, 1, 0], axis=1)
    count = jnp.float32(T_out * Cout)
    mean = s / count
    var = jnp.maximum(ss / count - mean * mean, 0.0)
    rstd = jax.lax.rsqrt(var + jnp.float32(1e-8))
    g = gamma.astype(jnp.float32)[None, :]
    bta = beta.astype(jnp.float32)[None, :]
    scale = g * rstd[:, None]                                        # (B, Cout)
    shift = bta - mean[:, None] * scale + scale * bias.astype(jnp.float32)[None, :]
    scale = scale.reshape(B, Cout, 1)
    shift = shift.reshape(B, Cout, 1)
    alpha2 = jnp.asarray(alpha, jnp.float32).reshape(1, 1)

    # ---------------- Pass 2: recompute conv, folded GlobLN + PReLU ----------------
    act_kernel = functools.partial(_conv_norm_act_kernel, ksize=K)
    in_specs2 = ([x_spec] + ([halo_spec] if K > 1 else []) + [
        w_spec,
        pl.BlockSpec((1, Cout, 1), lambda b, t: (b, 0, 0)),
        pl.BlockSpec((1, Cout, 1), lambda b, t: (b, 0, 0)),
        pl.BlockSpec(memory_space=pltpu.MemorySpace.SMEM),
    ])
    in_args2 = [x_p] + ([x_p] if K > 1 else []) + [w2d, scale, shift, alpha2]

    out_pad = pl.pallas_call(
        act_kernel,
        out_shape=jax.ShapeDtypeStruct((B, Cout, t_out_pad), x_ncl.dtype),
        grid_spec=pltpu.PrefetchScalarGridSpec(
            num_scalar_prefetch=0, grid=(B, nt),
            in_specs=in_specs2,
            out_specs=pl.BlockSpec((1, Cout, t_tile), lambda b, t: (b, 0, t))),
        compiler_params=cparams,
    )(*in_args2)

    if t_out_pad != T_out:
        out_pad = out_pad[:, :, :T_out]
    return out_pad


def _reference(x_ncl, weight, bias, gamma, beta, alpha, *, ksize):
    """Pure-JAX reference matching the PyTorch module."""
    pad = (ksize - 1) // 2
    out = jax.lax.conv_general_dilated(
        x_ncl, weight, window_strides=(1,), padding=[(pad, pad)],
        dimension_numbers=("NCH", "OIH", "NCH"))
    out = out + bias[None, :, None]
    mean = jnp.mean(out, axis=(1, 2), keepdims=True)
    var = jnp.mean((out - mean) ** 2, axis=(1, 2), keepdims=True)
    normed = (out - mean) / jnp.sqrt(var + 1e-8)
    y = gamma[None, :, None] * normed + beta[None, :, None]
    return jnp.where(y >= 0, y, alpha * y)


if __name__ == "__main__":
    # Small shapes consistent with the module's forward: Conv1d input [B, nIn, T].
    B, nIn, nOut, T, kSize = 2, 4, 8, 16, 3

    key = jax.random.PRNGKey(0)
    k_x, k_w, k_b, k_x2, k_w1 = jax.random.split(key, 5)

    x = jax.random.normal(k_x, (B, nIn, T), dtype=jnp.float32)

    # Deterministic parameter init (shapes from the module's __init__).
    fan_in = nIn * kSize
    bound = 1.0 / (fan_in ** 0.5)
    weight = jax.random.uniform(k_w, (nOut, nIn, kSize), jnp.float32,
                                minval=-bound, maxval=bound)
    bias = jax.random.uniform(k_b, (nOut,), jnp.float32,
                              minval=-bound, maxval=bound)
    gamma = jnp.ones((nOut,), jnp.float32)   # GlobLN gamma init = 1
    beta = jnp.zeros((nOut,), jnp.float32)   # GlobLN beta  init = 0
    alpha = jnp.float32(0.25)                # nn.PReLU() default slope

    # 1) Exact-precision path (f32 MXU inputs).
    out = conv_norm_act(x, weight, bias, gamma, beta, alpha,
                        compute_dtype=jnp.float32)
    out = jax.block_until_ready(out)
    ref = _reference(x, weight, bias, gamma, beta, alpha, ksize=kSize)
    assert out.shape == (B, nOut, T), out.shape
    assert jnp.allclose(out, ref, rtol=1e-3, atol=1e-3), "mismatch vs reference"

    # 2) Multi-tile path: exercises the 128-lane cross-tile halo and the
    #    pl.when-gated masked statistics of the last (ragged) tile.
    T2 = 300
    x2 = jax.random.normal(k_x2, (B, nIn, T2), dtype=jnp.float32)
    out2 = conv_norm_act(x2, weight, bias, gamma, beta, alpha,
                         t_tile=128, compute_dtype=jnp.float32)
    out2 = jax.block_until_ready(out2)
    ref2 = _reference(x2, weight, bias, gamma, beta, alpha, ksize=kSize)
    assert out2.shape == (B, nOut, T2), out2.shape
    assert jnp.allclose(out2, ref2, rtol=1e-3, atol=1e-3), "mismatch (tiled)"

    # 3) Default production path (bf16 MXU inputs, f32 accumulation): looser tol.
    out3 = conv_norm_act(x2, weight, bias, gamma, beta, alpha, t_tile=128)
    out3 = jax.block_until_ready(out3)
    assert out3.shape == (B, nOut, T2), out3.shape
    assert jnp.allclose(out3.astype(jnp.float32), ref2, rtol=5e-2, atol=5e-2), \
        "mismatch (bf16 compute)"

    # 4) Pointwise conv (K == 1): no halo input, no concat.
    w1 = jax.random.uniform(k_w1, (nOut, nIn, 1), jnp.float32,
                            minval=-0.5, maxval=0.5)
    out4 = conv_norm_act(x2, w1, bias, gamma, beta, alpha,
                         t_tile=128, compute_dtype=jnp.float32)
    out4 = jax.block_until_ready(out4)
    ref4 = _reference(x2, w1, bias, gamma, beta, alpha, ksize=1)
    assert out4.shape == (B, nOut, T2), out4.shape
    assert jnp.allclose(out4, ref4, rtol=1e-3, atol=1e-3), "mismatch (K=1)"

    print("KERNEL_OK")
</pallas_src>

<mosaic_0001>
module attributes {stable_mosaic.version = 11 : i64} {
  func.func @_conv_stats_kernel(%arg0: i32, %arg1: i32, %arg2: memref<1x8x128xf32, #tpu.memory_space<vmem>>, %arg3: memref<1x8x128xf32, #tpu.memory_space<vmem>>, %arg4: memref<8x24xf32, #tpu.memory_space<vmem>>, %arg5: memref<8x1xf32, #tpu.memory_space<vmem>>, %arg6: memref<1x1x2x128xf32, #tpu.memory_space<vmem>>) attributes {dimension_semantics = [#tpu.dimension_semantics<parallel>, #tpu.dimension_semantics<parallel>], iteration_bounds = array<i64: 2, 1>, scalar_prefetch = 0 : i64, scratch_operands = 0 : i64, tpu.core_type = #tpu.core_type<tc>, window_params = [{transform_indices = @transform_0, window_bounds = array<i64: 1, 8, 128>}, {transform_indices = @transform_1, window_bounds = array<i64: 1, 8, 128>}, {pipeline_mode = #tpu.pipeline_mode<synchronous>, transform_indices = @transform_2, window_bounds = array<i64: 8, 24>}, {pipeline_mode = #tpu.pipeline_mode<synchronous>, transform_indices = @transform_3, window_bounds = array<i64: 8, 1>}, {transform_indices = @transform_4, window_bounds = array<i64: 1, 1, 2, 128>}]} {
    %c0 = arith.constant 0 : index
    %c0_0 = arith.constant 0 : index
    %c0_1 = arith.constant 0 : index
    %0 = vector.load %arg2[%c0, %c0_0, %c0_1] : memref<1x8x128xf32, #tpu.memory_space<vmem>>, vector<1x8x128xf32>
    %1 = vector.shape_cast %0 : vector<1x8x128xf32> to vector<8x128xf32>
    %c0_2 = arith.constant 0 : index
    %c0_3 = arith.constant 0 : index
    %c0_4 = arith.constant 0 : index
    %2 = vector.load %arg3[%c0_2, %c0_3, %c0_4] : memref<1x8x128xf32, #tpu.memory_space<vmem>>, vector<1x8x128xf32>
    %3 = vector.shape_cast %2 : vector<1x8x128xf32> to vector<8x128xf32>
    %4 = tpu.concatenate %1, %3 in 1 : vector<8x128xf32>, vector<8x128xf32> -> vector<8x256xf32>
    %5 = vector.extract_strided_slice %4 {offsets = [0, 1], sizes = [8, 128], strides = [1, 1]} : vector<8x256xf32> to vector<8x128xf32>
    %6 = vector.extract_strided_slice %4 {offsets = [0, 2], sizes = [8, 128], strides = [1, 1]} : vector<8x256xf32> to vector<8x128xf32>
    %7 = tpu.concatenate %1, %5, %6 in 0 : vector<8x128xf32>, vector<8x128xf32>, vector<8x128xf32> -> vector<24x128xf32>
    %c0_5 = arith.constant 0 : index
    %c0_6 = arith.constant 0 : index
    %8 = vector.load %arg4[%c0_5, %c0_6] : memref<8x24xf32, #tpu.memory_space<vmem>>, vector<8x24xf32>
    %cst = arith.constant dense<0.000000e+00> : vector<8x128xf32>
    %9 = tpu.matmul %8, %7, %cst {dimension_numbers = #tpu.dot_dimension_numbers<[1], [0], [0], [1], [0, 0, 1, 1], [], []>} : vector<8x24xf32>, vector<24x128xf32>, vector<8x128xf32> -> vector<8x128xf32>
    %c0_7 = arith.constant 0 : index
    %c0_8 = arith.constant 0 : index
    %10 = vector.load %arg5[%c0_7, %c0_8] : memref<8x1xf32, #tpu.memory_space<vmem>>, vector<8x1xf32>
    %11 = vector.broadcast %10 : vector<8x1xf32> to vector<8x128xf32>
    %12 = arith.addf %9, %11 : vector<8x128xf32>
    %c0_i32 = arith.constant 0 : i32
    %13 = arith.cmpi ne, %arg1, %c0_i32 : i32
    %14 = arith.extui %13 : i1 to i32
    %c0_i32_9 = arith.constant 0 : i32
    %15 = arith.cmpi ne, %14, %c0_i32_9 : i32
    scf.if %15 {
      %19 = vector.shape_cast %12 : vector<8x128xf32> to vector<1x8x128xf32>
      %cst_12 = arith.constant dense<0.000000e+00> : vector<1xf32>
      %20 = vector.multi_reduction <add>, %19, %cst_12 [1, 2] : vector<1x8x128xf32> to vector<1xf32>
      %21 = vector.shape_cast %20 : vector<1xf32> to vector<1x1x1xf32>
      %22 = vector.extract %21[0, 0, 0] : f32 from vector<1x1x1xf32>
      %23 = arith.mulf %12, %12 : vector<8x128xf32>
      %24 = vector.shape_cast %23 : vector<8x128xf32> to vector<1x8x128xf32>
      %cst_13 = arith.constant dense<0.000000e+00> : vector<1xf32>
      %25 = vector.multi_reduction <add>, %24, %cst_13 [1, 2] : vector<1x8x128xf32> to vector<1xf32>
      %26 = vector.shape_cast %25 : vector<1xf32> to vector<1x1x1xf32>
      %27 = vector.extract %26[0, 0, 0] : f32 from vector<1x1x1xf32>
      %28 = tpu.iota {dimensions = array<i32: 0>} : vector<2x128xi32>
      %c0_i32_14 = arith.constant 0 : i32
      %29 = vector.broadcast %c0_i32_14 : i32 to vector<2x128xi32>
      %30 = arith.cmpi eq, %28, %29 : vector<2x128xi32>
      %31 = vector.broadcast %22 : f32 to vector<2x128xf32>
      %32 = vector.broadcast %27 : f32 to vector<2x128xf32>
      %33 = arith.select %30, %31, %32 : vector<2x128xi1>, vector<2x128xf32>
      %c0_15 = arith.constant 0 : index
      %c0_16 = arith.constant 0 : index
      %c0_17 = arith.constant 0 : index
      %c0_18 = arith.constant 0 : index
      %34 = vector.load %arg6[%c0_15, %c0_16, %c0_17, %c0_18] : memref<1x1x2x128xf32, #tpu.memory_space<vmem>>, vector<1x1x2x128xf32>
      %35 = vector.shape_cast %34 : vector<1x1x2x128xf32> to vector<2x128xf32>
      %36 = vector.shape_cast %33 : vector<2x128xf32> to vector<1x1x2x128xf32>
      tpu.vector_store %arg6[%c0_15, %c0_16, %c0_17, %c0_18], %36 {strides = array<i32>} : memref<1x1x2x128xf32, #tpu.memory_space<vmem>>, vector<1x1x2x128xf32>,
    } else {
    }
    %c0_i32_10 = arith.constant 0 : i32
    %16 = arith.cmpi eq, %arg1, %c0_i32_10 : i32
    %17 = arith.extui %16 : i1 to i32
    %c0_i32_11 = arith.constant 0 : i32
    %18 = arith.cmpi ne, %17, %c0_i32_11 : i32
    scf.if %18 {
      %19 = tpu.iota {dimensions = array<i32: 1>} : vector<8x128xi32>
      %c16_i32 = arith.constant 16 : i32
      %20 = vector.broadcast %c16_i32 : i32 to vector<8x128xi32>
      %21 = arith.cmpi slt, %19, %20 : vector<8x128xi32>
      %cst_12 = arith.constant 0.000000e+00 : f32
      %22 = vector.broadcast %cst_12 : f32 to vector<8x128xf32>
      %23 = arith.select %21, %12, %22 : vector<8x128xi1>, vector<8x128xf32>
      %24 = vector.shape_cast %23 : vector<8x128xf32> to vector<1x8x128xf32>
      %cst_13 = arith.constant dense<0.000000e+00> : vector<1xf32>
      %25 = vector.multi_reduction <add>, %24, %cst_13 [1, 2] : vector<1x8x128xf32> to vector<1xf32>
      %26 = vector.shape_cast %25 : vector<1xf32> to vector<1x1x1xf32>
      %27 = vector.extract %26[0, 0, 0] : f32 from vector<1x1x1xf32>
      %28 = arith.mulf %23, %23 : vector<8x128xf32>
      %29 = vector.shape_cast %28 : vector<8x128xf32> to vector<1x8x128xf32>
      %cst_14 = arith.constant dense<0.000000e+00> : vector<1xf32>
      %30 = vector.multi_reduction <add>, %29, %cst_14 [1, 2] : vector<1x8x128xf32> to vector<1xf32>
      %31 = vector.shape_cast %30 : vector<1xf32> to vector<1x1x1xf32>
      %32 = vector.extract %31[0, 0, 0] : f32 from vector<1x1x1xf32>
      %33 = tpu.iota {dimensions = array<i32: 0>} : vector<2x128xi32>
      %c0_i32_15 = arith.constant 0 : i32
      %34 = vector.broadcast %c0_i32_15 : i32 to vector<2x128xi32>
      %35 = arith.cmpi eq, %33, %34 : vector<2x128xi32>
      %36 = vector.broadcast %27 : f32 to vector<2x128xf32>
      %37 = vector.broadcast %32 : f32 to vector<2x128xf32>
      %38 = arith.select %35, %36, %37 : vector<2x128xi1>, vector<2x128xf32>
      %c0_16 = arith.constant 0 : index
      %c0_17 = arith.constant 0 : index
      %c0_18 = arith.constant 0 : index
      %c0_19 = arith.constant 0 : index
      %39 = vector.load %arg6[%c0_16, %c0_17, %c0_18, %c0_19] : memref<1x1x2x128xf32, #tpu.memory_space<vmem>>, vector<1x1x2x128xf32>
      %40 = vector.shape_cast %39 : vector<1x1x2x128xf32> to vector<2x128xf32>
      %41 = vector.shape_cast %38 : vector<2x128xf32> to vector<1x1x2x128xf32>
      tpu.vector_store %arg6[%c0_16, %c0_17, %c0_18, %c0_19], %41 {strides = array<i32>} : memref<1x1x2x128xf32, #tpu.memory_space<vmem>>, vector<1x1x2x128xf32>,
    } else {
    }
    return
  }
  func.func @transform_0(%arg0: i32, %arg1: i32) -> (i32, i32, i32) {
    %c0_i32 = arith.constant 0 : i32
    %c0_i32_0 = arith.constant 0 : i32
    return %arg0, %c0_i32, %arg1 : i32, i32, i32
  }
  func.func @transform_1(%arg0: i32, %arg1: i32) -> (i32, i32, i32) {
    %c1_i32 = arith.constant 1 : i32
    %0 = arith.addi %arg1, %c1_i32 : i32
    %c1_i32_0 = arith.constant 1 : i32
    %1 = arith.muli %0, %c1_i32_0 : i32
    %c0_i32 = arith.constant 0 : i32
    %c0_i32_1 = arith.constant 0 : i32
    return %arg0, %c0_i32, %1 : i32, i32, i32
  }
  func.func @transform_2(%arg0: i32, %arg1: i32) -> (i32, i32) {
    %c0_i32 = arith.constant 0 : i32
    %c0_i32_0 = arith.constant 0 : i32
    %c0_i32_1 = arith.constant 0 : i32
    return %c0_i32, %c0_i32_0 : i32, i32
  }
  func.func @transform_3(%arg0: i32, %arg1: i32) -> (i32, i32) {
    %c0_i32 = arith.constant 0 : i32
    %c0_i32_0 = arith.constant 0 : i32
    %c0_i32_1 = arith.constant 0 : i32
    return %c0_i32, %c0_i32_0 : i32, i32
  }
  func.func @transform_4(%arg0: i32, %arg1: i32) -> (i32, i32, i32, i32) {
    %c0_i32 = arith.constant 0 : i32
    %c0_i32_0 = arith.constant 0 : i32
    %c0_i32_1 = arith.constant 0 : i32
    return %arg0, %arg1, %c0_i32, %c0_i32_0 : i32, i32, i32, i32
  }
}

</mosaic_0001>

<llo_original>
// kernel: tpu_custom_call.1
$region0: #{tpu_custom_call.1}
  #allocation0 [shape = 'u32[]', space=smem, size = 0x4, offset = 0x4, fixed_abs, tag = 'smem constant byte address 0x4 - core index']
  #allocation1 [shape = 'u32[144,128]{1,0:T(1,128)}', space=vmem, size = 0x12000, scoped, tag = 'internal scratch']
  %s0 = inlined_call_operand.hbm [shape: f32[2,8,256], index: 0, kind: input, shape index: {}]
  %s1 = inlined_call_operand.hbm [shape: f32[2,8,256], index: 1, kind: input, shape index: {}]
  %s2 = inlined_call_operand.vmem [shape: f32[8,24], index: 2, kind: input, shape index: {}]
  %s3 = inlined_call_operand.vmem [shape: f32[8,1], index: 3, kind: input, shape index: {}]
  %s4 = inlined_call_operand.hbm [shape: f32[2,1,2,128], index: 4, kind: output, shape index: {}]
  %s5 = sld [smem:[#allocation0]]
  $region65: #{tpu_custom_call.1} parent=0
    _
  %s7 = ssub.s32 1, %s5
  %s8 = scalar_select 0, %s7, %s5
  $region1: #{tpu_custom_call.1} parent=0
    #allocation2 [shape = 'u8[8192]{0}', space=vmem, size = 0x2000, scoped, tag = 'input window, operand 0']
    #allocation3 [shape = 's32[2]{0}', space=sflag, size = 0x8, scoped, tag = 'scoped memory for tpu_custom_call.1']
    #allocation4 [shape = 's32[2]{0}', space=sflag, size = 0x8, scoped, tag = 'scoped memory for tpu_custom_call.1']
    #allocation5 [shape = 'u8[8192]{0}', space=vmem, size = 0x2000, scoped, tag = 'input window, operand 1']
    #allocation6 [shape = 's32[2]{0}', space=sflag, size = 0x8, scoped, tag = 'scoped memory for tpu_custom_call.1']
    #allocation7 [shape = 'u8[2048]{0}', space=vmem, size = 0x800, scoped, tag = 'output window, operand 0']
    %9 = vsyncpa [#allocation3], 0
    %s10 = scalar_lea.sflag [#allocation3], 1
    %11 = vsyncpa %s10, 0
    %12 = vsyncpa [#allocation6], 0
    %s13 = scalar_lea.sflag [#allocation6], 1
    %14 = vsyncpa %s13, 0
    %15 = vsyncpa [#allocation4], 0
    %s16 = scalar_lea.sflag [#allocation4], 1
    %17 = vsyncpa %s16, 0
    loop: start=0, step=1, limit=4
    $region2: #{tpu_custom_call.1} parent=1 // loop_pre_header
      _
    $region3: #{tpu_custom_call.1} parent=1 // loop_header
      %s19 = sphi 0, %s23
      %p20 = scmp.ge.s32.totalorder %s19, 4
      %s26 = sphi 0, %s38
      %s27 = sphi 0, %s34
      %s28 = sphi 0, %s26
      %s29 = sphi 0, %s27
      %s30 = sphi 0, %s28
      %s31 = sphi 0, %s29
      %s43 = sphi 0, %s45
      %s46 = sphi 0, %s43
      %s47 = sphi 0, %s46
      %s63 = sphi 0, %s47
      %s73 = sphi 0, %s75
      %s76 = sphi 0, %s73
      %s77 = sphi 0, %s76
      %s93 = sphi 0, %s77
      %s97 = sphi 0, %s97
      %s99 = sphi 0, %s97
      %s100 = sphi 0, %s99
      %s114 = sphi 0, %s100
      %s118 = sphi 0, %s118
      %s120 = sphi 0, %s118
      %s121 = sphi 0, %s120
      %s135 = sphi 0, %s121
      %s143 = sphi 0, %s145
      %s146 = sphi 0, %s143
      %s147 = sphi 0, %s146
      %s163 = sphi 0, %s147
    $region4: #{tpu_custom_call.1} parent=1 // loop_header_branch
      %22 = sbr.rel (%p20) target = $region8
    $region5: #{tpu_custom_call.1} parent=1 // loop_body
      %s24 = ssub.s32 %s19, 1
      %s25 = ssub.s32 %s19, 2
      %s32 = sadd.s32 1, %s27
      %p33 = scmp.ge.s32.totalorder %s32, 1
      %s34 = scalar_select %p33, 0, %s32
      %s35 = sadd.s32 1, %s26
      %s36 = scalar_select %p33, %s35, %s26
      %p37 = scmp.ge.s32.totalorder %s36, 2
      %s38 = scalar_select %p37, 0, %s36
      %s39 = ssub.s32 %s26, %s38
      %s40 = ssub.s32 %s27, %s34
      %s41 = sor.u32 %s39, %s40
      %p42 = scmp.eq.s32.totalorder %s41, 0
      %s44 = sadd.s32 %s43, 1
      %s45 = scalar_select %p42, %s43, %s44
      %p48 = pneg %p42
      %p49 = scmp.eq.s32.totalorder %s19, 1
      %p50 = por %p48, %p49
      %p51 = scmp.ne.s32.totalorder %s43, %s46
      %p52 = scmp.eq.s32.totalorder %s19, 0
      %p53 = por %p51, %p52
      %p54 = scmp.ne.s32.totalorder %s43, %s46
      %p55 = scmp.eq.s32.totalorder %s24, 1
      %p56 = por %p54, %p55
      %p57 = scmp.ne.s32.totalorder %s46, %s47
      %p58 = scmp.eq.s32.totalorder %s24, 0
      %p59 = por %p57, %p58
      %p60 = scmp.ne.s32.totalorder %s46, %s47
      %p61 = scmp.eq.s32.totalorder %s25, 1
      %p62 = por %p60, %p61
      %p64 = scmp.ne.s32.totalorder %s47, %s63
      %p65 = scmp.eq.s32.totalorder %s25, 0
      %p66 = por %p64, %p65
      %s67 = sadd.s32 %s27, 1
      %s68 = sadd.s32 %s34, 1
      %s69 = ssub.s32 %s26, %s38
      %s70 = ssub.s32 %s67, %s68
      %s71 = sor.u32 %s69, %s70
      %p72 = scmp.eq.s32.totalorder %s71, 0
      %s74 = sadd.s32 %s73, 1
      %s75 = scalar_select %p72, %s73, %s74
      %p78 = pneg %p72
      %p79 = scmp.eq.s32.totalorder %s19, 1
      %p80 = por %p78, %p79
      %p81 = scmp.ne.s32.totalorder %s73, %s76
      %p82 = scmp.eq.s32.totalorder %s19, 0
      %p83 = por %p81, %p82
      %p84 = scmp.ne.s32.totalorder %s73, %s76
      %p85 = scmp.eq.s32.totalorder %s24, 1
      %p86 = por %p84, %p85
      %p87 = scmp.ne.s32.totalorder %s76, %s77
      %p88 = scmp.eq.s32.totalorder %s24, 0
      %p89 = por %p87, %p88
      %p90 = scmp.ne.s32.totalorder %s76, %s77
      %p91 = scmp.eq.s32.totalorder %s25, 1
      %p92 = por %p90, %p91
      %p94 = scmp.ne.s32.totalorder %s77, %s93
      %p95 = scmp.eq.s32.totalorder %s25, 0
      %p96 = por %p94, %p95
      %s98 = sadd.s32 %s97, 1
      %p101 = scmp.eq.s32.totalorder %s19, 1
      %p102 = scmp.ne.s32.totalorder %s97, %s99
      %p103 = scmp.eq.s32.totalorder %s19, 0
      %p104 = por %p102, %p103
      %p105 = scmp.ne.s32.totalorder %s97, %s99
      %p106 = scmp.eq.s32.totalorder %s24, 1
      %p107 = por %p105, %p106
      %p108 = scmp.ne.s32.totalorder %s99, %s100
      %p109 = scmp.eq.s32.totalorder %s24, 0
      %p110 = por %p108, %p109
      %p111 = scmp.ne.s32.totalorder %s99, %s100
      %p112 = scmp.eq.s32.totalorder %s25, 1
      %p113 = por %p111, %p112
      %p115 = scmp.ne.s32.totalorder %s100, %s114
      %p116 = scmp.eq.s32.totalorder %s25, 0
      %p117 = por %p115, %p116
      %s119 = sadd.s32 %s118, 1
      %p122 = scmp.eq.s32.totalorder %s19, 1
      %p123 = scmp.ne.s32.totalorder %s118, %s120
      %p124 = scmp.eq.s32.totalorder %s19, 0
      %p125 = por %p123, %p124
      %p126 = scmp.ne.s32.totalorder %s118, %s120
      %p127 = scmp.eq.s32.totalorder %s24, 1
      %p128 = por %p126, %p127
      %p129 = scmp.ne.s32.totalorder %s120, %s121
      %p130 = scmp.eq.s32.totalorder %s24, 0
      %p131 = por %p129, %p130
      %p132 = scmp.ne.s32.totalorder %s120, %s121
      %p133 = scmp.eq.s32.totalorder %s25, 1
      %p134 = por %p132, %p133
      %p136 = scmp.ne.s32.totalorder %s121, %s135
      %p137 = scmp.eq.s32.totalorder %s25, 0
      %p138 = por %p136, %p137
      %s139 = ssub.s32 %s26, %s38
      %s140 = ssub.s32 %s27, %s34
      %s141 = sor.u32 %s139, %s140
      %p142 = scmp.eq.s32.totalorder %s141, 0
      %s144 = sadd.s32 %s143, 1
      %s145 = scalar_select %p142, %s143, %s144
      %p148 = pneg %p142
      %p149 = scmp.eq.s32.totalorder %s19, 1
      %p150 = por %p148, %p149
      %p151 = scmp.ne.s32.totalorder %s143, %s146
      %p152 = scmp.eq.s32.totalorder %s19, 0
      %p153 = por %p151, %p152
      %p154 = scmp.ne.s32.totalorder %s143, %s146
      %p155 = scmp.eq.s32.totalorder %s24, 1
      %p156 = por %p154, %p155
      %p157 = scmp.ne.s32.totalorder %s146, %s147
      %p158 = scmp.eq.s32.totalorder %s24, 0
      %p159 = por %p157, %p158
      %p160 = scmp.ne.s32.totalorder %s146, %s147
      %p161 = scmp.eq.s32.totalorder %s25, 1
      %p162 = por %p160, %p161
      %p164 = scmp.ne.s32.totalorder %s147, %s163
      %p165 = scmp.eq.s32.totalorder %s25, 0
      %p166 = por %p164, %p165
      %p167 = scmp.le.s32.totalorder 1, %s19
      %p168 = scmp.lt.s32.totalorder %s19, 3
      %p169 = pnand %p167, %p168
      %p170 = pneg %p169
      // Predicated region
      $region9: #{tpu_custom_call.1} parent=5 // pred_check
        _
      $region10: #{tpu_custom_call.1} parent=5 // pred_check_branch
        %172 = sbr.rel (%p169) target = $region12
      $region11: #{tpu_custom_call.1} parent=5 // pred_region
        %s173 = ssub.s32 %s19, 1
        // Predicated region
        $region13: #{tpu_custom_call.1} parent=11 // pred_check
          %p174 = pneg %p110
        $region14: #{tpu_custom_call.1} parent=11 // pred_check_branch
          %176 = sbr.rel (%p174) target = $region16
        $region15: #{tpu_custom_call.1} parent=11 // pred_region
          _
        $region16: #{tpu_custom_call.1} parent=11 // pred_fallthru
          _
        // Predicated region
        $region17: #{tpu_custom_call.1} parent=11 // pred_check
          %p177 = pneg %p131
        $region18: #{tpu_custom_call.1} parent=11 // pred_check_branch
          %179 = sbr.rel (%p177) target = $region20
        $region19: #{tpu_custom_call.1} parent=11 // pred_region
          _
        $region20: #{tpu_custom_call.1} parent=11 // pred_fallthru
          _
      $region12: #{tpu_custom_call.1} parent=5 // pred_fallthru
        _
      %p180 = scmp.lt.s32.totalorder %s19, 2
      // Predicated region
      $region21: #{tpu_custom_call.1} parent=5 // pred_check
        %p181 = pneg %p180
      $region22: #{tpu_custom_call.1} parent=5 // pred_check_branch
        %183 = sbr.rel (%p181) target = $region24
      $region23: #{tpu_custom_call.1} parent=5 // pred_region
        // Predicated region
        $region25: #{tpu_custom_call.1} parent=23 // pred_check
          %p184 = pneg %p53
        $region26: #{tpu_custom_call.1} parent=23 // pred_check_branch
          %186 = sbr.rel (%p184) target = $region28
        $region27: #{tpu_custom_call.1} parent=23 // pred_region
          %s187 = sand.u32 %s43, 1
          %s188 = scalar_lea.sflag [#allocation3], %s187
          %s189 = sand.u32 %s43, 1
          %s190 = smul.addr %s189, 8
          %s191 = scalar_lea.vmem [#allocation2], %s190
          %s193 = ssub.s32 128, 128
          %194 = vsyncadd %s188, %s193
          %s195 = smul.addr %s26, 2
          %s196 = sadd.s32 %s27, %s195
          %s197 = smul.addr %s196, 128
          %s198 = scalar_lea.hbm %s0, %s197
          %s200 = sshll.u32 %s191, 4
          %s201 = int_to_ptr.vmem [resolvable:$true] %s200
          %203 = dma.hbm_to_vmem [thread:$0]  %s198, 128, %s201, %s188
        $region28: #{tpu_custom_call.1} parent=23 // pred_fallthru
          _
        // Predicated region
        $region29: #{tpu_custom_call.1} parent=23 // pred_check
          %p204 = pneg %p83
        $region30: #{tpu_custom_call.1} parent=23 // pred_check_branch
          %206 = sbr.rel (%p204) target = $region32
        $region31: #{tpu_custom_call.1} parent=23 // pred_region
          %s207 = sand.u32 %s73, 1
          %s208 = scalar_lea.sflag [#allocation6], %s207
          %s209 = sand.u32 %s73, 1
          %s210 = smul.addr %s209, 8
          %s211 = scalar_lea.vmem [#allocation5], %s210
          %s212 = sadd.s32 %s27, 1
          %s214 = ssub.s32 128, 128
          %215 = vsyncadd %s208, %s214
          %s216 = smul.addr %s26, 2
          %s217 = sadd.s32 %s212, %s216
          %s218 = smul.addr %s217, 128
          %s219 = scalar_lea.hbm %s1, %s218
          %s221 = sshll.u32 %s211, 4
          %s222 = int_to_ptr.vmem [resolvable:$true] %s221
          %224 = dma.hbm_to_vmem [thread:$0]  %s219, 128, %s222, %s208
        $region32: #{tpu_custom_call.1} parent=23 // pred_fallthru
          _
      $region24: #{tpu_custom_call.1} parent=5 // pred_fallthru
        _
      %p225 = scmp.le.s32.totalorder 1, %s19
      %p226 = scmp.lt.s32.totalorder %s19, 3
      %p227 = pnand %p225, %p226
      %p228 = pneg %p227
      // Predicated region
      $region33: #{tpu_custom_call.1} parent=5 // pred_check
        _
      $region34: #{tpu_custom_call.1} parent=5 // pred_check_branch
        %230 = sbr.rel (%p227) target = $region36
      $region35: #{tpu_custom_call.1} parent=5 // pred_region
        %s231 = ssub.s32 %s19, 1
        %s232 = sand.u32 %s46, 1
        %s233 = scalar_lea.sflag [#allocation3], %s232
        %s234 = sand.u32 %s46, 1
        %s235 = smul.addr %s234, 8
        %s236 = scalar_lea.vmem [#allocation2], %s235
        // Predicated region
        $region37: #{tpu_custom_call.1} parent=35 // pred_check
          %p237 = pneg %p59
        $region38: #{tpu_custom_call.1} parent=35 // pred_check_branch
          %239 = sbr.rel (%p237) target = $region40
        $region39: #{tpu_custom_call.1} parent=35 // pred_region
          %240 = dma.done %s233, 128
        $region40: #{tpu_custom_call.1} parent=35 // pred_fallthru
          _
        %s241 = sand.u32 %s76, 1
        %s242 = scalar_lea.sflag [#allocation6], %s241
        %s243 = sand.u32 %s76, 1
        %s244 = smul.addr %s243, 8
        %s245 = scalar_lea.vmem [#allocation5], %s244
        // Predicated region
        $region41: #{tpu_custom_call.1} parent=35 // pred_check
          %p246 = pneg %p89
        $region42: #{tpu_custom_call.1} parent=35 // pred_check_branch
          %248 = sbr.rel (%p246) target = $region44
        $region43: #{tpu_custom_call.1} parent=35 // pred_region
          %249 = dma.done %s242, 128
        $region44: #{tpu_custom_call.1} parent=35 // pred_fallthru
          _
        %s250 = sand.u32 %s46, 1
        %s251 = scalar_lea.sflag [#allocation3], %s250
        %s252 = sand.u32 %s46, 1
        %s253 = smul.addr %s252, 8
        %s254 = scalar_lea.vmem [#allocation2], %s253
        %p255 = pneg %p59
        %p256 = pneg %p56
        %s257 = sand.u32 %s76, 1
        %s258 = scalar_lea.sflag [#allocation6], %s257
        %s259 = sand.u32 %s76, 1
        %s260 = smul.addr %s259, 8
        %s261 = scalar_lea.vmem [#allocation5], %s260
        %p262 = pneg %p89
        %p263 = pneg %p86
        %p264 = pneg %p110
        %p265 = pneg %p107
        %p266 = pneg %p131
        %p267 = pneg %p128
        %p268 = pneg %p159
        %p269 = pneg %p156
        %s270 = sand.u32 %s146, 1
        %s271 = scalar_lea.sflag [#allocation4], %s270
        %s272 = sand.u32 %s146, 1
        %s273 = smul.addr %s272, 2
        %s274 = scalar_lea.vmem [#allocation7], %s273
        %s275 = sadd.s32 %s29, 1
        %v276 = vld [vmem:[%s236] sm:$0xff]
        %v277 = vld [vmem:[%s245] sm:$0xff]
        %280 = vrot.lane.b32.xlu0 %v276, 127
        %v281 = vpop.permute.xlu0 %280
        %282 = vrot.lane.b32.xlu0 %v277, 127
        %v283 = vpop.permute.xlu0 %282
        %vm284 = vcmask 1039360
        %v285 = vsel %vm284, %v281, %v283
        %287 = vrot.lane.b32.xlu0 %v276, 126
        %v288 = vpop.permute.xlu0 %287
        %289 = vrot.lane.b32.xlu0 %v277, 126
        %v290 = vpop.permute.xlu0 %289
        %vm291 = vcmask 1031168
        %v292 = vsel %vm291, %v288, %v290
        %v294 = vld [vmem:[%s2] sm:$0xff]
        %v295 = vld [vmem:[%s3] sm:$0xff]
        %297 = vset.pattern.permute.xlu0 0
        %298 = vperm.xlu0 %297, %v295
        %v299 = vpop.permute.xlu0 %298
        %vm301 = vcmask 195584
        %v303 = vsel %vm301, %v294, 0
        %305 = vmatprep.subr.mxu0 0.0
        %306 = vmatpush1.msra.mxu0 0.0
        %307 = vmatprep.subr.mxu0 0.0
        %308 = vmatpush1.msra.mxu0 0.0
        %309 = vmatprep.subr.mxu0 0.0
        %310 = vmatpush1.msra.mxu0 0.0
        %311 = vmatprep.subr.mxu0 0.0
        %312 = vmatpush1.msra.mxu0 0.0
        %313 = vmatprep.subr.mxu0 0.0
        %314 = vmatpush1.msra.mxu0 0.0
        %315 = vmatprep.subr.mxu0 0.0
        %316 = vmatpush1.msra.mxu0 0.0
        %317 = vmatprep.subr.mxu0 0.0
        %318 = vmatpush1.msra.mxu0 0.0
        %319 = vmatprep.subr.mxu0 0.0
        %320 = vmatpush1.msra.mxu0 0.0
        %321 = vmatprep.subr.mxu0 0.0
        %322 = vmatpush1.msra.mxu0 0.0
        %323 = vmatprep.subr.mxu0 0.0
        %324 = vmatpush1.msra.mxu0 0.0
        %325 = vmatprep.subr.mxu0 0.0
        %326 = vmatpush1.msra.mxu0 0.0
        %327 = vmatprep.subr.mxu0 0.0
        %328 = vmatpush1.msra.mxu0 0.0
        %329 = vmatprep.subr.mxu0 0.0
        %330 = vmatpush1.msra.mxu0 0.0
        %331 = vmatprep.subr.mxu0 0.0
        %332 = vmatpush1.msra.mxu0 %v292
        %333 = vmatprep.subr.mxu0 0.0
        %334 = vmatpush1.msra.mxu0 %v285
        %335 = vmatprep.subr.mxu0 0.0
        %336 = vmatpush1.msra.mxu0 %v276
        %337 = vmatprep.subr.mxu0 0.0
        %338 = vmatpush2.msra.mxu0 0.0
        %339 = vmatprep.subr.mxu0 0.0
        %340 = vmatpush2.msra.mxu0 0.0
        %341 = vmatprep.subr.mxu0 0.0
        %342 = vmatpush2.msra.mxu0 0.0
        %343 = vmatprep.subr.mxu0 0.0
        %344 = vmatpush2.msra.mxu0 0.0
        %345 = vmatprep.subr.mxu0 0.0
        %346 = vmatpush2.msra.mxu0 0.0
        %347 = vmatprep.subr.mxu0 0.0
        %348 = vmatpush2.msra.mxu0 0.0
        %349 = vmatprep.subr.mxu0 0.0
        %350 = vmatpush2.msra.mxu0 0.0
        %351 = vmatprep.subr.mxu0 0.0
        %352 = vmatpush2.msra.mxu0 0.0
        %353 = vmatprep.subr.mxu0 0.0
        %354 = vmatpush2.msra.mxu0 0.0
        %355 = vmatprep.subr.mxu0 0.0
        %356 = vmatpush2.msra.mxu0 0.0
        %357 = vmatprep.subr.mxu0 0.0
        %358 = vmatpush2.msra.mxu0 0.0
        %359 = vmatprep.subr.mxu0 0.0
        %360 = vmatpush2.msra.mxu0 0.0
        %361 = vmatprep.subr.mxu0 0.0
        %362 = vmatpush2.msra.mxu0 0.0
        %363 = vmatprep.subr.mxu0 0.0
        %364 = vmatpush2.msra.mxu0 0.0
        %365 = vmatprep.subr.mxu0 0.0
        %366 = vmatpush2.msra.mxu0 0.0
        %367 = vmatprep.subr.mxu0 0.0
        %368 = vmatpush2.msra.mxu0 0.0
        %369 = vmatprep.mubr.f32.mxu0 0.0
        %370 = vmatmul.mubr.f32.gmra.mxu0 %v303
        %v371 = vpop.f32.mrf.mxu0
        %v372 = vadd.f32 %v299, %v371
        %v373 = vpop.f32.mrf.mxu0
        %374 = vdwg.mxu0
        %p375 = scmp.ne.s32.totalorder %s29, 0
        // Predicated region
        $region45: #{tpu_custom_call.1} parent=35 // pred_check
          %p376 = pneg %p375
        $region46: #{tpu_custom_call.1} parent=35 // pred_check_branch
          %378 = sbr.rel (%p376) target = $region48
        $region47: #{tpu_custom_call.1} parent=35 // pred_region
          %379 = vadd.xlane.f32.xlu0 %v372
          %v380 = vpop.xlane.xlu0 %379
          %v381 = vrot.slane %v380, 4
          %v382 = vadd.f32 %v380, %v381
          %v383 = vrot.slane %v382, 2
          %v384 = vadd.f32 %v382, %v383
          %v385 = vrot.slane %v384, 1
          %v386 = vadd.f32 %v384, %v385
          %s387 = vtos %v386
          %v388 = vmul.f32 %v372, %v372
          %389 = vadd.xlane.f32.xlu0 %v388
          %v390 = vpop.xlane.xlu0 %389
          %v391 = vrot.slane %v390, 4
          %v392 = vadd.f32 %v390, %v391
          %v393 = vrot.slane %v392, 2
          %v394 = vadd.f32 %v392, %v393
          %v395 = vrot.slane %v394, 1
          %v396 = vadd.f32 %v394, %v395
          %s397 = vtos %v396
          %v398 = vlaneseq
          %v399 = vshrl.u32 %v398, 7
          %vm400 = vcmp.eq.s32.totalorder %v399, 0
          %v401 = vstv %s387
          %v402 = vstv %s397
          %v403 = vsel %vm400, %v401, %v402
          %404 = vst [vmem:[%s274] sm:$0x3] %v403
        $region48: #{tpu_custom_call.1} parent=35 // pred_fallthru
          _
        %p405 = scmp.eq.s32.totalorder %s29, 0
        // Predicated region
        $region49: #{tpu_custom_call.1} parent=35 // pred_check
          %p406 = pneg %p405
        $region50: #{tpu_custom_call.1} parent=35 // pred_check_branch
          %408 = sbr.rel (%p406) target = $region52
        $region51: #{tpu_custom_call.1} parent=35 // pred_region
          %v409 = vlaneseq
          %v410 = vand.u32 %v409, 127
          %vm411 = vcmp.lt.s32.totalorder %v410, 16
          %v412 = vsel %vm411, %v372, 0.0
          %413 = vadd.xlane.f32.xlu0 %v412
          %v414 = vpop.xlane.xlu0 %413
          %v415 = vrot.slane %v414, 4
          %v416 = vadd.f32 %v414, %v415
          %v417 = vrot.slane %v416, 2
          %v418 = vadd.f32 %v416, %v417
          %v419 = vrot.slane %v418, 1
          %v420 = vadd.f32 %v418, %v419
          %s421 = vtos %v420
          %v422 = vmul.f32 %v412, %v412
          %423 = vadd.xlane.f32.xlu0 %v422
          %v424 = vpop.xlane.xlu0 %423
          %v425 = vrot.slane %v424, 4
          %v426 = vadd.f32 %v424, %v425
          %v427 = vrot.slane %v426, 2
          %v428 = vadd.f32 %v426, %v427
          %v429 = vrot.slane %v428, 1
          %v430 = vadd.f32 %v428, %v429
          %s431 = vtos %v430
          %v432 = vlaneseq
          %v433 = vshrl.u32 %v432, 7
          %vm434 = vcmp.eq.s32.totalorder %v433, 0
          %v435 = vstv %s421
          %v436 = vstv %s431
          %v437 = vsel %vm434, %v435, %v436
          %438 = vst [vmem:[%s274] sm:$0x3] %v437
        $region52: #{tpu_custom_call.1} parent=35 // pred_fallthru
          _
        %s439 = sand.u32 %s146, 1
        %s440 = scalar_lea.sflag [#allocation4], %s439
        %s441 = sand.u32 %s146, 1
        %s442 = smul.addr %s441, 2
        %s443 = scalar_lea.vmem [#allocation7], %s442
        // Predicated region
        $region53: #{tpu_custom_call.1} parent=35 // pred_check
          %p444 = pneg %p156
        $region54: #{tpu_custom_call.1} parent=35 // pred_check_branch
          %446 = sbr.rel (%p444) target = $region56
        $region55: #{tpu_custom_call.1} parent=35 // pred_region
          %s448 = ssub.s32 32, 32
          %449 = vsyncadd %s440, %s448
          %s450 = sadd.s32 %s29, %s28
          %s451 = smul.addr %s450, 32
          %s452 = scalar_lea.hbm %s4, %s451
          %s454 = sshll.u32 %s443, 4
          %s455 = int_to_ptr.vmem [resolvable:$true] %s454
          %457 = dma.vmem_to_hbm [thread:$0]  %s455, 32, %s452, %s440
        $region56: #{tpu_custom_call.1} parent=35 // pred_fallthru
          _
      $region36: #{tpu_custom_call.1} parent=5 // pred_fallthru
        _
      %p458 = scmp.le.s32.totalorder 2, %s19
      // Predicated region
      $region57: #{tpu_custom_call.1} parent=5 // pred_check
        %p459 = pneg %p458
      $region58: #{tpu_custom_call.1} parent=5 // pred_check_branch
        %461 = sbr.rel (%p459) target = $region60
      $region59: #{tpu_custom_call.1} parent=5 // pred_region
        %s462 = ssub.s32 %s19, 2
        // Predicated region
        $region61: #{tpu_custom_call.1} parent=59 // pred_check
          %p463 = pneg %p162
        $region62: #{tpu_custom_call.1} parent=59 // pred_check_branch
          %465 = sbr.rel (%p463) target = $region64
        $region63: #{tpu_custom_call.1} parent=59 // pred_region
          %s466 = sand.u32 %s147, 1
          %s467 = scalar_lea.sflag [#allocation4], %s466
          %s468 = sand.u32 %s147, 1
          %s469 = smul.addr %s468, 2
          %s470 = scalar_lea.vmem [#allocation7], %s469
          %471 = dma.done %s467, 32
        $region64: #{tpu_custom_call.1} parent=59 // pred_fallthru
          _
      $region60: #{tpu_custom_call.1} parent=5 // pred_fallthru
        _
    $region6: #{tpu_custom_call.1} parent=1 // loop_footer
      %s23 = sadd.s32 1, %s19
    $region7: #{tpu_custom_call.1} parent=1 // loop_footer_branch
      %18 = sbr.rel target = $region3
    $region8: #{tpu_custom_call.1} parent=1 // loop_exit
      _
    %472 = vsyncpa [#allocation3], 1
    %s473 = scalar_lea.sflag [#allocation3], 1
    %474 = vsyncpa %s473, 1
    %475 = vsyncpa [#allocation6], 1
    %s476 = scalar_lea.sflag [#allocation6], 1
    %477 = vsyncpa %s476, 1
    %478 = vsyncpa [#allocation4], 1
    %s479 = scalar_lea.sflag [#allocation4], 1
    %480 = vsyncpa %s479, 1

</llo_original>
